<compile_context>
chip_gen: v7x
topology: tpu7x:2x2x1
jax: 0.10.0
libtpu: 0.0.40
codegen_flags: <defaults>
</compile_context>

<pallas_src>
import math
import functools

import numpy as np
import jax
import jax.numpy as jnp
from jax import lax
from jax.experimental import pallas as pl
from jax.experimental.pallas import tpu as pltpu


def _lfr_kernel(len_ref, clamp_ref, x_ref, o_ref, pad_ref, *,
                m, n, left, right_pad, T, D, W):
    """One batch element per grid step.

    len_ref:   SMEM (B,) int32  valid input length per batch element.
    clamp_ref: SMEM (B,) int32  source-frame index used for timeline positions
               t >= left + len (mirrors PyTorch's gather of padded[T_all_max-1]).
    x_ref:     VMEM (1, T, D)        input block.
    o_ref:     VMEM (1, W, m*D)      output block (frames concatenated on lanes).
    pad_ref:   VMEM (T + m - 1, D)   scratch: edge-clamped padded timeline.
    """
    b = pl.program_id(0)
    L = len_ref[b]                                   # valid length (scalar)
    c = clamp_ref[b]                                 # clamp source frame (scalar)

    clamp_row = x_ref[0, pl.ds(c, 1), :]             # (1, D)

    # ---- build the padded timeline: [head | clamped body | tail] ----
    # body rows t in [left, left+T): frame (t-left) while valid, clamp after.
    t_ids = lax.broadcasted_iota(jnp.int32, (T, 1), 0)
    pad_ref[pl.ds(left, T), :] = jnp.where(t_ids < L, x_ref[0], clamp_row)
    if left > 0:                                     # head: repeat frame 0
        pad_ref[pl.ds(0, left), :] = jnp.broadcast_to(x_ref[0, 0:1, :], (left, D))
    if right_pad > 0:                                # static tail: clamp frame
        pad_ref[pl.ds(left + T, right_pad), :] = jnp.broadcast_to(
            clamp_row, (right_pad, D))

    # ---- window stacking: m strided (W, D) slab copies ----
    # out[b, w, j*D:(j+1)*D] = pad[w*n + j, :]
    for j in range(m):                               # m is small & static
        o_ref[0, :, pl.ds(j * D, D)] = pad_ref[pl.ds(j, W, stride=n), :]


def lfr_forward(x, input_lens, m=7, n=6):
    """JAX/Pallas equivalent of wenet paraformer LFR.forward.

    Returns (out, new_len) with out of shape (B, W, m*D) where
    W = ceil(T / n) is a *static* upper bound on the per-utterance window
    count; rows beyond new_len[b] are clamp-filled padding (as in PyTorch,
    consumers must respect new_len).
    """
    orig_dtype = input_lens.dtype
    B, T, D = x.shape
    left = math.ceil((m - 1) // 2)           # keep PyTorch's (floored) value
    right_pad = max(m - 1 - left, 0)         # static bound on right padding
    T_pad = T + left + right_pad             # = T + m - 1
    W = (T_pad - m) // n + 1                 # static window count = ceil(T/n)

    # ---- length bookkeeping (device side, mirrors the PyTorch module) ----
    lens = input_lens.astype(jnp.int32)
    n_lfr = -(-lens // n)                                 # ceil(lens / n)
    rem = lens + left - n * (n_lfr - 1)
    right = jnp.where(m >= rem, m - rem, 0)
    T_all = left + lens + right
    new_len = (T_all // n).astype(orig_dtype)

    # Frame index that PyTorch's "clamp to padded[T_all_max - 1]" gather ends
    # up reading, computed fully on device (no host round trip).
    p = jnp.max(T_all) - 1
    clamp_src = jnp.where(
        p < left, 0,
        jnp.where(p < left + T, p - left, lens - 1)).astype(jnp.int32)   # (B,)

    itemsize = jnp.dtype(x.dtype).itemsize
    in_bytes = B * T * D * itemsize
    out_bytes = B * W * m * D * itemsize
    # Per-step VMEM: double-buffered input + output tiles plus timeline scratch.
    per_step = itemsize * (2 * T * D + 2 * W * m * D + T_pad * D)
    vmem_limit = min(64 * 1024 * 1024, max(32 * 1024 * 1024, int(1.5 * per_step)))

    kernel = functools.partial(_lfr_kernel, m=m, n=n, left=left,
                               right_pad=right_pad, T=T, D=D, W=W)
    out = pl.pallas_call(
        kernel,
        out_shape=jax.ShapeDtypeStruct((B, W, m * D), x.dtype),
        grid_spec=pltpu.PrefetchScalarGridSpec(
            num_scalar_prefetch=2,
            grid=(B,),
            in_specs=[pl.BlockSpec((1, T, D), lambda b, l, c: (b, 0, 0))],
            out_specs=pl.BlockSpec((1, W, m * D), lambda b, l, c: (b, 0, 0)),
            scratch_shapes=[pltpu.VMEM((T_pad, D), x.dtype)],
        ),
        compiler_params=pltpu.CompilerParams(
            dimension_semantics=("parallel",),
            vmem_limit_bytes=vmem_limit),
        cost_estimate=pl.CostEstimate(
            flops=0, transcendentals=0,
            bytes_accessed=in_bytes + out_bytes),
    )(lens, clamp_src, x)

    return out, new_len


def _lfr_reference_numpy(x, lens, m=7, n=6):
    """Direct numpy transcription of the PyTorch forward (for verification)."""
    x = np.asarray(x)
    lens = np.asarray(lens).astype(np.int64)
    B, T, D = x.shape
    left = math.ceil((m - 1) // 2)
    n_lfr = np.ceil(lens / n).astype(np.int64)
    prepad = lens + left
    rem = prepad - n * (n_lfr - 1)
    right = np.where(m >= rem, m - rem, 0)
    T_all = left + lens + right
    new_len = T_all // n
    T_all_max = int(T_all.max())

    tail = x[np.arange(B), lens - 1][:, None, :]                    # (B,1,D)
    rmax = int(right.max())
    tail = np.repeat(tail, rmax, axis=1) if rmax > 0 else tail[:, :0]
    head = np.repeat(x[:, 0:1, :], left, axis=1)
    xp = np.concatenate([head, x, tail], axis=1)

    idx = np.repeat(np.arange(T_all_max)[None, :], B, axis=0)
    mask = idx < (left + lens)[:, None]
    idx2 = np.where(mask, idx, T_all_max - 1)
    g = np.take_along_axis(xp, np.repeat(idx2[:, :, None], D, axis=2), axis=1)

    Wd = (T_all_max - m) // n + 1
    out = np.stack([g[:, w * n:w * n + m, :] for w in range(Wd)], axis=1)
    return out.reshape(B, Wd, m * D), new_len


if __name__ == "__main__":
    key = jax.random.PRNGKey(0)
    B, T, D = 2, 16, 32
    x = jax.random.normal(key, (B, T, D), dtype=jnp.float32)
    input_lens = jnp.array([16, 9], dtype=jnp.int32)

    out, new_len = lfr_forward(x, input_lens, m=7, n=6)
    out = jax.block_until_ready(out)
    new_len = jax.block_until_ready(new_len)

    ref_out, ref_len = _lfr_reference_numpy(np.asarray(x), np.asarray(input_lens))
    W_ref = ref_out.shape[1]
    assert out.shape[1] >= W_ref
    # Windows within the PyTorch output must match bit-exactly; any extra
    # trailing windows are clamp-filled padding masked by new_len downstream.
    np.testing.assert_allclose(np.asarray(out)[:, :W_ref, :], ref_out,
                               rtol=0, atol=0)
    np.testing.assert_array_equal(np.asarray(new_len).astype(np.int64), ref_len)

    print("KERNEL_OK")
</pallas_src>

<mosaic_0001>
module attributes {stable_mosaic.version = 11 : i64} {
  func.func @_lfr_kernel(%arg0: i32, %arg1: memref<2xi32, #tpu.memory_space<smem>>, %arg2: memref<2xi32, #tpu.memory_space<smem>>, %arg3: memref<1x16x32xf32, #tpu.memory_space<vmem>>, %arg4: memref<1x3x224xf32, #tpu.memory_space<vmem>>, %arg5: memref<22x32xf32, #tpu.memory_space<vmem>>) attributes {dimension_semantics = [#tpu.dimension_semantics<parallel>], iteration_bounds = array<i64: 2>, scalar_prefetch = 2 : i64, scratch_operands = 1 : i64, tpu.core_type = #tpu.core_type<tc>, window_params = [{transform_indices = @transform_0, window_bounds = array<i64: 1, 16, 32>}, {transform_indices = @transform_1, window_bounds = array<i64: 1, 3, 224>}]} {
    %0 = arith.index_cast %arg0 : i32 to index
    %1 = memref.load %arg1[%0] : memref<2xi32, #tpu.memory_space<smem>>
    %2 = arith.index_cast %arg0 : i32 to index
    %3 = memref.load %arg2[%2] : memref<2xi32, #tpu.memory_space<smem>>
    %c0 = arith.constant 0 : index
    %4 = arith.index_cast %3 : i32 to index
    %c0_0 = arith.constant 0 : index
    %5 = vector.load %arg3[%c0, %4, %c0_0] : memref<1x16x32xf32, #tpu.memory_space<vmem>>, vector<1x1x32xf32>
    %6 = vector.shape_cast %5 : vector<1x1x32xf32> to vector<1x32xf32>
    %7 = tpu.iota {dimensions = array<i32: 0>} : vector<16x1xi32>
    %8 = vector.broadcast %1 : i32 to vector<16x1xi32>
    %9 = arith.cmpi slt, %7, %8 : vector<16x1xi32>
    %c0_1 = arith.constant 0 : index
    %c0_2 = arith.constant 0 : index
    %c0_3 = arith.constant 0 : index
    %10 = vector.load %arg3[%c0_1, %c0_2, %c0_3] : memref<1x16x32xf32, #tpu.memory_space<vmem>>, vector<1x16x32xf32>
    %11 = vector.shape_cast %10 : vector<1x16x32xf32> to vector<16x32xf32>
    %12 = vector.shape_cast %9 : vector<16x1xi1> to vector<16x1xi1>
    %13 = vector.broadcast %12 : vector<16x1xi1> to vector<16x32xi1>
    %14 = vector.shape_cast %6 : vector<1x32xf32> to vector<1x32xf32>
    %15 = vector.broadcast %14 : vector<1x32xf32> to vector<16x32xf32>
    %16 = arith.select %13, %11, %15 : vector<16x32xi1>, vector<16x32xf32>
    %c3 = arith.constant 3 : index
    %c0_4 = arith.constant 0 : index
    %17 = vector.load %arg5[%c3, %c0_4] : memref<22x32xf32, #tpu.memory_space<vmem>>, vector<16x32xf32>
    tpu.vector_store %arg5[%c3, %c0_4], %16 {strides = array<i32>} : memref<22x32xf32, #tpu.memory_space<vmem>>, vector<16x32xf32>,
    %c0_5 = arith.constant 0 : index
    %c0_6 = arith.constant 0 : index
    %c0_7 = arith.constant 0 : index
    %18 = vector.load %arg3[%c0_5, %c0_6, %c0_7] : memref<1x16x32xf32, #tpu.memory_space<vmem>>, vector<1x1x32xf32>
    %19 = vector.shape_cast %18 : vector<1x1x32xf32> to vector<1x32xf32>
    %20 = vector.shape_cast %19 : vector<1x32xf32> to vector<1x32xf32>
    %21 = vector.broadcast %20 : vector<1x32xf32> to vector<3x32xf32>
    %c0_8 = arith.constant 0 : index
    %c0_9 = arith.constant 0 : index
    %22 = vector.load %arg5[%c0_8, %c0_9] : memref<22x32xf32, #tpu.memory_space<vmem>>, vector<3x32xf32>
    tpu.vector_store %arg5[%c0_8, %c0_9], %21 {strides = array<i32>} : memref<22x32xf32, #tpu.memory_space<vmem>>, vector<3x32xf32>,
    %23 = vector.shape_cast %6 : vector<1x32xf32> to vector<1x32xf32>
    %24 = vector.broadcast %23 : vector<1x32xf32> to vector<3x32xf32>
    %c19 = arith.constant 19 : index
    %c0_10 = arith.constant 0 : index
    %25 = vector.load %arg5[%c19, %c0_10] : memref<22x32xf32, #tpu.memory_space<vmem>>, vector<3x32xf32>
    tpu.vector_store %arg5[%c19, %c0_10], %24 {strides = array<i32>} : memref<22x32xf32, #tpu.memory_space<vmem>>, vector<3x32xf32>,
    %c0_11 = arith.constant 0 : index
    %c0_12 = arith.constant 0 : index
    %26 = tpu.strided_load %arg5[%c0_11, %c0_12] {strides = array<i32: 6, 1>} : memref<22x32xf32, #tpu.memory_space<vmem>>, vector<3x32xf32>
    %c0_13 = arith.constant 0 : index
    %c0_14 = arith.constant 0 : index
    %c0_15 = arith.constant 0 : index
    %27 = vector.load %arg4[%c0_13, %c0_14, %c0_15] : memref<1x3x224xf32, #tpu.memory_space<vmem>>, vector<1x3x32xf32>
    %28 = vector.shape_cast %27 : vector<1x3x32xf32> to vector<3x32xf32>
    %29 = vector.shape_cast %26 : vector<3x32xf32> to vector<1x3x32xf32>
    tpu.vector_store %arg4[%c0_13, %c0_14, %c0_15], %29 {strides = array<i32>} : memref<1x3x224xf32, #tpu.memory_space<vmem>>, vector<1x3x32xf32>,
    %c1 = arith.constant 1 : index
    %c0_16 = arith.constant 0 : index
    %30 = tpu.strided_load %arg5[%c1, %c0_16] {strides = array<i32: 6, 1>} : memref<22x32xf32, #tpu.memory_space<vmem>>, vector<3x32xf32>
    %c0_17 = arith.constant 0 : index
    %c0_18 = arith.constant 0 : index
    %c32 = arith.constant 32 : index
    %31 = vector.load %arg4[%c0_17, %c0_18, %c32] : memref<1x3x224xf32, #tpu.memory_space<vmem>>, vector<1x3x32xf32>
    %32 = vector.shape_cast %31 : vector<1x3x32xf32> to vector<3x32xf32>
    %33 = vector.shape_cast %30 : vector<3x32xf32> to vector<1x3x32xf32>
    tpu.vector_store %arg4[%c0_17, %c0_18, %c32], %33 {strides = array<i32>} : memref<1x3x224xf32, #tpu.memory_space<vmem>>, vector<1x3x32xf32>,
    %c2 = arith.constant 2 : index
    %c0_19 = arith.constant 0 : index
    %34 = tpu.strided_load %arg5[%c2, %c0_19] {strides = array<i32: 6, 1>} : memref<22x32xf32, #tpu.memory_space<vmem>>, vector<3x32xf32>
    %c0_20 = arith.constant 0 : index
    %c0_21 = arith.constant 0 : index
    %c64 = arith.constant 64 : index
    %35 = vector.load %arg4[%c0_20, %c0_21, %c64] : memref<1x3x224xf32, #tpu.memory_space<vmem>>, vector<1x3x32xf32>
    %36 = vector.shape_cast %35 : vector<1x3x32xf32> to vector<3x32xf32>
    %37 = vector.shape_cast %34 : vector<3x32xf32> to vector<1x3x32xf32>
    tpu.vector_store %arg4[%c0_20, %c0_21, %c64], %37 {strides = array<i32>} : memref<1x3x224xf32, #tpu.memory_space<vmem>>, vector<1x3x32xf32>,
    %c3_22 = arith.constant 3 : index
    %c0_23 = arith.constant 0 : index
    %38 = tpu.strided_load %arg5[%c3_22, %c0_23] {strides = array<i32: 6, 1>} : memref<22x32xf32, #tpu.memory_space<vmem>>, vector<3x32xf32>
    %c0_24 = arith.constant 0 : index
    %c0_25 = arith.constant 0 : index
    %c96 = arith.constant 96 : index
    %39 = vector.load %arg4[%c0_24, %c0_25, %c96] : memref<1x3x224xf32, #tpu.memory_space<vmem>>, vector<1x3x32xf32>
    %40 = vector.shape_cast %39 : vector<1x3x32xf32> to vector<3x32xf32>
    %41 = vector.shape_cast %38 : vector<3x32xf32> to vector<1x3x32xf32>
    tpu.vector_store %arg4[%c0_24, %c0_25, %c96], %41 {strides = array<i32>} : memref<1x3x224xf32, #tpu.memory_space<vmem>>, vector<1x3x32xf32>,
    %c4 = arith.constant 4 : index
    %c0_26 = arith.constant 0 : index
    %42 = tpu.strided_load %arg5[%c4, %c0_26] {strides = array<i32: 6, 1>} : memref<22x32xf32, #tpu.memory_space<vmem>>, vector<3x32xf32>
    %c0_27 = arith.constant 0 : index
    %c0_28 = arith.constant 0 : index
    %c128 = arith.constant 128 : index
    %43 = vector.load %arg4[%c0_27, %c0_28, %c128] : memref<1x3x224xf32, #tpu.memory_space<vmem>>, vector<1x3x32xf32>
    %44 = vector.shape_cast %43 : vector<1x3x32xf32> to vector<3x32xf32>
    %45 = vector.shape_cast %42 : vector<3x32xf32> to vector<1x3x32xf32>
    tpu.vector_store %arg4[%c0_27, %c0_28, %c128], %45 {strides = array<i32>} : memref<1x3x224xf32, #tpu.memory_space<vmem>>, vector<1x3x32xf32>,
    %c5 = arith.constant 5 : index
    %c0_29 = arith.constant 0 : index
    %46 = tpu.strided_load %arg5[%c5, %c0_29] {strides = array<i32: 6, 1>} : memref<22x32xf32, #tpu.memory_space<vmem>>, vector<3x32xf32>
    %c0_30 = arith.constant 0 : index
    %c0_31 = arith.constant 0 : index
    %c160 = arith.constant 160 : index
    %47 = vector.load %arg4[%c0_30, %c0_31, %c160] : memref<1x3x224xf32, #tpu.memory_space<vmem>>, vector<1x3x32xf32>
    %48 = vector.shape_cast %47 : vector<1x3x32xf32> to vector<3x32xf32>
    %49 = vector.shape_cast %46 : vector<3x32xf32> to vector<1x3x32xf32>
    tpu.vector_store %arg4[%c0_30, %c0_31, %c160], %49 {strides = array<i32>} : memref<1x3x224xf32, #tpu.memory_space<vmem>>, vector<1x3x32xf32>,
    %c6 = arith.constant 6 : index
    %c0_32 = arith.constant 0 : index
    %50 = tpu.strided_load %arg5[%c6, %c0_32] {strides = array<i32: 6, 1>} : memref<22x32xf32, #tpu.memory_space<vmem>>, vector<3x32xf32>
    %c0_33 = arith.constant 0 : index
    %c0_34 = arith.constant 0 : index
    %c192 = arith.constant 192 : index
    %51 = vector.load %arg4[%c0_33, %c0_34, %c192] : memref<1x3x224xf32, #tpu.memory_space<vmem>>, vector<1x3x32xf32>
    %52 = vector.shape_cast %51 : vector<1x3x32xf32> to vector<3x32xf32>
    %53 = vector.shape_cast %50 : vector<3x32xf32> to vector<1x3x32xf32>
    tpu.vector_store %arg4[%c0_33, %c0_34, %c192], %53 {strides = array<i32>} : memref<1x3x224xf32, #tpu.memory_space<vmem>>, vector<1x3x32xf32>,
    return
  }
  func.func @transform_0(%arg0: i32, %arg1: memref<2xi32, #tpu.memory_space<smem>>, %arg2: memref<2xi32, #tpu.memory_space<smem>>) -> (i32, i32, i32) {
    %c0_i32 = arith.constant 0 : i32
    %c0_i32_0 = arith.constant 0 : i32
    %c0_i32_1 = arith.constant 0 : i32
    return %arg0, %c0_i32, %c0_i32_0 : i32, i32, i32
  }
  func.func @transform_1(%arg0: i32, %arg1: memref<2xi32, #tpu.memory_space<smem>>, %arg2: memref<2xi32, #tpu.memory_space<smem>>) -> (i32, i32, i32) {
    %c0_i32 = arith.constant 0 : i32
    %c0_i32_0 = arith.constant 0 : i32
    %c0_i32_1 = arith.constant 0 : i32
    return %arg0, %c0_i32, %c0_i32_0 : i32, i32, i32
  }
}

</mosaic_0001>

<llo_original>
// kernel: tpu_custom_call.1
$region0: #{tpu_custom_call.1}
  #allocation0 [shape = 'u32[]', space=smem, size = 0x4, offset = 0x4, fixed_abs, tag = 'smem constant byte address 0x4 - core index']
  #allocation1 [shape = 'u32[144,128]{1,0:T(1,128)}', space=vmem, size = 0x12000, scoped, tag = 'internal scratch']
  #allocation2 [shape = 'f32[22,32]{1,0:T(8,128)}', space=vmem, size = 0x3000, scoped, tag = 'scratch operand']
  #allocation3 [shape = 's32[1]{0}', space=sflag, size = 0x4, scoped, tag = 'scoped memory for tpu_custom_call.1']
  #allocation4 [shape = 'u8[512]{0}', space=smem, size = 0x200, scoped, tag = 'prefetched SMEM operand 0']
  #allocation5 [shape = 'u8[512]{0}', space=smem, size = 0x200, scoped, tag = 'prefetched SMEM operand 1']
  %s0 = inlined_call_operand.hbm [shape: s32[2], index: 0, kind: input, shape index: {}]
  %s1 = inlined_call_operand.vmem [shape: s32[2], index: 1, kind: input, shape index: {}]
  %s2 = inlined_call_operand.hbm [shape: f32[2,16,32], index: 2, kind: input, shape index: {}]
  %s3 = inlined_call_operand.vmem [shape: f32[2,3,224], index: 3, kind: output, shape index: {}]
  %s4 = sld [smem:[#allocation0]]
  $region41: #{tpu_custom_call.1} parent=0
    _
  %s6 = ssub.s32 1, %s4
  %s7 = scalar_select 0, %s6, %s4
  %9 = dma.hbm_to_smem %s0, 16, [#allocation4], [#allocation3]
  %s10 = sshll.u32 %s1, 4
  %s11 = int_to_ptr.vmem [resolvable:$true] %s10
  %13 = dma.vmem_to_smem %s11, 16, [#allocation5], [#allocation3]
  %14 = dma.done [#allocation3], 32
  %15 = sfence
  $region1: #{tpu_custom_call.1} parent=0
    #allocation6 [shape = 'u8[16384]{0}', space=vmem, size = 0x4000, scoped, tag = 'input window, operand 2']
    #allocation7 [shape = 's32[2]{0}', space=sflag, size = 0x8, scoped, tag = 'scoped memory for tpu_custom_call.1']
    %16 = vsyncpa [#allocation7], 0
    %s17 = scalar_lea.sflag [#allocation7], 1
    %18 = vsyncpa %s17, 0
    loop: start=0, step=1, limit=4
    $region2: #{tpu_custom_call.1} parent=1 // loop_pre_header
      _
    $region3: #{tpu_custom_call.1} parent=1 // loop_header
      %s20 = sphi 0, %s24
      %p21 = scmp.ge.s32.totalorder %s20, 4
      %s30 = sphi 0, %s32
      %s33 = sphi 0, %s30
      %s34 = sphi 0, %s33
      %s50 = sphi 0, %s34
      %s56 = sphi 0, %s58
      %s59 = sphi 0, %s56
      %s60 = sphi 0, %s59
      %s76 = sphi 0, %s60
    $region4: #{tpu_custom_call.1} parent=1 // loop_header_branch
      %23 = sbr.rel (%p21) target = $region8
    $region5: #{tpu_custom_call.1} parent=1 // loop_body
      %s25 = ssub.s32 %s20, 1
      %s26 = ssub.s32 %s20, 2
      %s27 = sadd.s32 %s20, 1
      %s28 = ssub.s32 %s20, %s27
      %p29 = scmp.eq.s32.totalorder %s28, 0
      %s31 = sadd.s32 %s30, 1
      %s32 = scalar_select %p29, %s30, %s31
      %p35 = pneg %p29
      %p36 = scmp.eq.s32.totalorder %s20, 1
      %p37 = por %p35, %p36
      %p38 = scmp.ne.s32.totalorder %s30, %s33
      %p39 = scmp.eq.s32.totalorder %s20, 0
      %p40 = por %p38, %p39
      %p41 = scmp.ne.s32.totalorder %s30, %s33
      %p42 = scmp.eq.s32.totalorder %s25, 1
      %p43 = por %p41, %p42
      %p44 = scmp.ne.s32.totalorder %s33, %s34
      %p45 = scmp.eq.s32.totalorder %s25, 0
      %p46 = por %p44, %p45
      %p47 = scmp.ne.s32.totalorder %s33, %s34
      %p48 = scmp.eq.s32.totalorder %s26, 1
      %p49 = por %p47, %p48
      %p51 = scmp.ne.s32.totalorder %s34, %s50
      %p52 = scmp.eq.s32.totalorder %s26, 0
      %p53 = por %p51, %p52
      %s54 = ssub.s32 %s20, %s27
      %p55 = scmp.eq.s32.totalorder %s54, 0
      %s57 = sadd.s32 %s56, 1
      %s58 = scalar_select %p55, %s56, %s57
      %p61 = pneg %p55
      %p62 = scmp.eq.s32.totalorder %s20, 1
      %p63 = por %p61, %p62
      %p64 = scmp.ne.s32.totalorder %s56, %s59
      %p65 = scmp.eq.s32.totalorder %s20, 0
      %p66 = por %p64, %p65
      %p67 = scmp.ne.s32.totalorder %s56, %s59
      %p68 = scmp.eq.s32.totalorder %s25, 1
      %p69 = por %p67, %p68
      %p70 = scmp.ne.s32.totalorder %s59, %s60
      %p71 = scmp.eq.s32.totalorder %s25, 0
      %p72 = por %p70, %p71
      %p73 = scmp.ne.s32.totalorder %s59, %s60
      %p74 = scmp.eq.s32.totalorder %s26, 1
      %p75 = por %p73, %p74
      %p77 = scmp.ne.s32.totalorder %s60, %s76
      %p78 = scmp.eq.s32.totalorder %s26, 0
      %p79 = por %p77, %p78
      %p80 = scmp.le.s32.totalorder 1, %s20
      %p81 = scmp.lt.s32.totalorder %s20, 3
      %p82 = pnand %p80, %p81
      %p83 = pneg %p82
      // Predicated region
      $region9: #{tpu_custom_call.1} parent=5 // pred_check
        _
      $region10: #{tpu_custom_call.1} parent=5 // pred_check_branch
        %85 = sbr.rel (%p82) target = $region12
      $region11: #{tpu_custom_call.1} parent=5 // pred_region
        %s86 = ssub.s32 %s20, 1
      $region12: #{tpu_custom_call.1} parent=5 // pred_fallthru
        _
      %p87 = scmp.lt.s32.totalorder %s20, 2
      // Predicated region
      $region13: #{tpu_custom_call.1} parent=5 // pred_check
        %p88 = pneg %p87
      $region14: #{tpu_custom_call.1} parent=5 // pred_check_branch
        %90 = sbr.rel (%p88) target = $region16
      $region15: #{tpu_custom_call.1} parent=5 // pred_region
        // Predicated region
        $region17: #{tpu_custom_call.1} parent=15 // pred_check
          %p91 = pneg %p40
        $region18: #{tpu_custom_call.1} parent=15 // pred_check_branch
          %93 = sbr.rel (%p91) target = $region20
        $region19: #{tpu_custom_call.1} parent=15 // pred_region
          %s94 = sand.u32 %s30, 1
          %s95 = scalar_lea.sflag [#allocation7], %s94
          %s96 = sand.u32 %s30, 1
          %s97 = smul.addr %s96, 16
          %s98 = scalar_lea.vmem [#allocation6], %s97
          %s100 = ssub.s32 256, 256
          %101 = vsyncadd %s95, %s100
          %s102 = smul.addr %s20, 2
          %s103 = smul.addr %s102, 128
          %s104 = scalar_lea.hbm %s2, %s103
          %s105 = sshll.u32 %s98, 4
          %s106 = int_to_ptr.vmem [resolvable:$true] %s105
          %111 = dma.hbm_to_vmem [thread:$0]  %s104, 256, %s106, %s95, 128, 128, 8
        $region20: #{tpu_custom_call.1} parent=15 // pred_fallthru
          _
      $region16: #{tpu_custom_call.1} parent=5 // pred_fallthru
        _
      %p112 = scmp.le.s32.totalorder 1, %s20
      %p113 = scmp.lt.s32.totalorder %s20, 3
      %p114 = pnand %p112, %p113
      %p115 = pneg %p114
      // Predicated region
      $region21: #{tpu_custom_call.1} parent=5 // pred_check
        _
      $region22: #{tpu_custom_call.1} parent=5 // pred_check_branch
        %117 = sbr.rel (%p114) target = $region24
      $region23: #{tpu_custom_call.1} parent=5 // pred_region
        %s118 = ssub.s32 %s20, 1
        %s119 = sand.u32 %s33, 1
        %s120 = scalar_lea.sflag [#allocation7], %s119
        %s121 = sand.u32 %s33, 1
        %s122 = smul.addr %s121, 16
        %s123 = scalar_lea.vmem [#allocation6], %s122
        // Predicated region
        $region25: #{tpu_custom_call.1} parent=23 // pred_check
          %p124 = pneg %p46
        $region26: #{tpu_custom_call.1} parent=23 // pred_check_branch
          %126 = sbr.rel (%p124) target = $region28
        $region27: #{tpu_custom_call.1} parent=23 // pred_region
          %127 = dma.done %s120, 256
        $region28: #{tpu_custom_call.1} parent=23 // pred_fallthru
          _
        %s128 = sand.u32 %s33, 1
        %s129 = scalar_lea.sflag [#allocation7], %s128
        %s130 = sand.u32 %s33, 1
        %s131 = smul.addr %s130, 16
        %s132 = scalar_lea.vmem [#allocation6], %s131
        %p133 = pneg %p46
        %p134 = pneg %p43
        %p135 = pneg %p72
        %p136 = pneg %p69
        %p137 = scmp.lt.s32.totalorder %s25, 1
        %s138 = scalar_select %p137, %s25, 1
        %s139 = smul.addr %s138, 2
        %s140 = smul.addr %s139, 4
        %s141 = scalar_lea.vmem %s3, %s140
        %p142 = scmp.lt.s32.totalorder %s25, 1
        %s143 = scalar_select %p142, %s25, 1
        %s144 = smul.addr %s143, 2
        %s145 = smul.addr %s144, 4
        %s146 = scalar_lea.vmem %s3, %s145
        %s147 = sld [smem:[#allocation4 + %s25]]
        %s148 = sld [smem:[#allocation5 + %s25]]
        %s149 = scalar_lea.vmem %s123, %s148 [#allocation6]
        %v150 = vld [vmem:[%s149] sm:$0x1]
        %v151 = vlaneseq
        %v152 = vshrl.u32 %v151, 7
        %v153 = vadd.s32 %v152, 8
        %v154 = vstv %s147
        %vm155 = vcmp.lt.s32.totalorder %v152, %v154
        %vm156 = vcmp.lt.s32.totalorder %v153, %v154
        %v157 = vld [vmem:[%s123] sm:$0xff]
        %v158 = vld [vmem:[%s123 + $0x8] sm:$0xff]
        %v159 = vsel %vm155, 1, 0
        %v160 = vsel %vm156, 1, 0
        %vm161 = vcmp.eq.s32.totalorder %v159, 1
        %vm162 = vcmp.eq.s32.totalorder %v160, 1
        %v163 = vlaneseq
        %v164 = vshrl.u32 %v163, 7
        %v165 = vsub.s32 0, %v164
        %v166 = vrot.slane %v150, %v165
        %v167 = vsel %vm161, %v157, %v166
        %v168 = vsel %vm162, %v158, %v166
        %vm169 = vcmask 261120
        %170 = vst.msk [vmem:[#allocation2 + $0x3] sm:$0xff] %vm169, %v167
        %171 = vst.msk [vmem:[#allocation2 + $0xb] sm:$0xff] %vm169, %v168
        %v172 = vld [vmem:[%s123] sm:$0x1]
        %v173 = vlaneseq
        %v174 = vshrl.u32 %v173, 7
        %v175 = vsub.s32 0, %v174
        %v176 = vrot.slane %v172, %v175
        %vm177 = vcmask 256000
        %178 = vst.msk [vmem:[#allocation2] sm:$0x7] %vm177, %v176
        %179 = vst.msk [vmem:[#allocation2 + $0x13] sm:$0x7] %vm177, %v166
        %v180 = vld [vmem:[#allocation2] ss:$6 sm:$0x7]
        %181 = vst.msk [vmem:[%s146] sm:$0x7] %vm177, %v180
        %s182 = scalar_lea.vmem [#allocation2], 1
        %v183 = vld [vmem:[%s182] ss:$6 sm:$0x7]
        %185 = vrot.lane.b32.xlu0 %v183, 32
        %v186 = vpop.permute.xlu0 %185
        %vm188 = vcmask 518400
        %189 = vst.msk [vmem:[%s146] sm:$0x7] %vm188, %v186
        %s190 = scalar_lea.vmem [#allocation2], 2
        %v191 = vld [vmem:[%s190] ss:$6 sm:$0x7]
        %193 = vrot.lane.b32.xlu0 %v191, 64
        %v194 = vpop.permute.xlu0 %193
        %vm196 = vcmask 780800
        %197 = vst.msk [vmem:[%s146] sm:$0x7] %vm196, %v194
        %s198 = scalar_lea.vmem [#allocation2], 3
        %v199 = vld [vmem:[%s198] ss:$6 sm:$0x7]
        %201 = vrot.lane.b32.xlu0 %v199, 96
        %v202 = vpop.permute.xlu0 %201
        %vm204 = vcmask 1043200
        %205 = vst.msk [vmem:[%s146] sm:$0x7] %vm204, %v202
        %s206 = scalar_lea.vmem [#allocation2], 4
        %v207 = vld [vmem:[%s206] ss:$6 sm:$0x7]
        %208 = vst.msk [vmem:[%s146 + $0x4] sm:$0x7] %vm177, %v207
        %s209 = scalar_lea.vmem [#allocation2], 5
        %v210 = vld [vmem:[%s209] ss:$6 sm:$0x7]
        %212 = vrot.lane.b32.xlu0 %v210, 32
        %v213 = vpop.permute.xlu0 %212
        %215 = vst.msk [vmem:[%s146 + $0x4] sm:$0x7] %vm188, %v213
        %s216 = scalar_lea.vmem [#allocation2], 6
        %v217 = vld [vmem:[%s216] ss:$6 sm:$0x7]
        %219 = vrot.lane.b32.xlu0 %v217, 64
        %v220 = vpop.permute.xlu0 %219
        %222 = vst.msk [vmem:[%s146 + $0x4] sm:$0x7] %vm196, %v220
        %p223 = scmp.lt.s32.totalorder %s25, 1
        %s224 = scalar_select %p223, %s25, 1
        %s225 = smul.addr %s224, 2
        %s226 = smul.addr %s225, 4
        %s227 = scalar_lea.vmem %s3, %s226
        // Predicated region
        $region29: #{tpu_custom_call.1} parent=23 // pred_check
          %p228 = pneg %p69
        $region30: #{tpu_custom_call.1} parent=23 // pred_check_branch
          %230 = sbr.rel (%p228) target = $region32
        $region31: #{tpu_custom_call.1} parent=23 // pred_region
          _
        $region32: #{tpu_custom_call.1} parent=23 // pred_fallthru
          _
      $region24: #{tpu_custom_call.1} parent=5 // pred_fallthru
        _
      %p231 = scmp.le.s32.totalorder 2, %s20
      // Predicated region
      $region33: #{tpu_custom_call.1} parent=5 // pred_check
        %p232 = pneg %p231
      $region34: #{tpu_custom_call.1} parent=5 // pred_check_branch
        %234 = sbr.rel (%p232) target = $region36
      $region35: #{tpu_custom_call.1} parent=5 // pred_region
        %s235 = ssub.s32 %s20, 2
        // Predicated region
        $region37: #{tpu_custom_call.1} parent=35 // pred_check
          %p236 = pneg %p75
        $region38: #{tpu_custom_call.1} parent=35 // pred_check_branch
          %238 = sbr.rel (%p236) target = $region40
        $region39: #{tpu_custom_call.1} parent=35 // pred_region
          %p239 = scmp.lt.s32.totalorder %s26, 1
          %s240 = scalar_select %p239, %s26, 1
          %s241 = smul.addr %s240, 2
          %s242 = smul.addr %s241, 4
          %s243 = scalar_lea.vmem %s3, %s242
        $region40: #{tpu_custom_call.1} parent=35 // pred_fallthru
          _
      $region36: #{tpu_custom_call.1} parent=5 // pred_fallthru
        _
    $region6: #{tpu_custom_call.1} parent=1 // loop_footer
      %s24 = sadd.s32 1, %s20
    $region7: #{tpu_custom_call.1} parent=1 // loop_footer_branch
      %19 = sbr.rel target = $region3
    $region8: #{tpu_custom_call.1} parent=1 // loop_exit
      _
    %244 = vsyncpa [#allocation7], 1
    %s245 = scalar_lea.sflag [#allocation7], 1
    %246 = vsyncpa %s245, 1

</llo_original>
